<compile_context>
chip_gen: v7x
topology: tpu7x:2x2x1
jax: 0.10.0
libtpu: 0.0.40
codegen_flags: <defaults>
</compile_context>

<pallas_src>
import jax
import jax.numpy as jnp
from jax import lax
from jax.experimental import pallas as pl
from jax.experimental.pallas import tpu as pltpu


def _round_up(x, m):
    return ((x + m - 1) // m) * m


def _clustering_kernel(z_ref, c_ref, csq_ref, q_ref):
    """One batch tile: z (TB, D) vs resident centers (K, D) -> q (TB, K)."""
    z = z_ref[...].astype(jnp.float32)          # (TB, D)  widen after DMA
    c = c_ref[...]                              # (K, D)   f32
    c_sq = csq_ref[...]                         # (1, K)   f32, precomputed

    z_sq = jnp.sum(z * z, axis=-1, keepdims=True)            # (TB, 1)

    # Contract the last dim of both operands directly -> no c.T / XLU transpose.
    cross = lax.dot_general(
        z, c,
        dimension_numbers=(((1,), (1,)), ((), ())),
        preferred_element_type=jnp.float32)                  # (TB, K)

    dist = z_sq + c_sq - 2.0 * cross                         # ||z - c||^2 expanded
    dist = jnp.maximum(dist, 0.0)                            # cancellation guard

    # Student-t (alpha=1): q = 1 / (1 + dist). EUP reciprocal + 1 Newton step.
    a = 1.0 + dist
    q = pl.reciprocal(a, approx=True)
    q = q * (2.0 - a * q)                                    # ~f32-exact
    # q ** ((1+1)/2) is the identity for alpha=1 -- nothing to do.

    s = jnp.sum(q, axis=-1, keepdims=True)                   # (TB, 1)
    inv = pl.reciprocal(s, approx=True)
    inv = inv * (2.0 - s * inv)
    q_ref[...] = (q * inv).astype(q_ref.dtype)


def clustering_layer(z, cluster_centers, *, block_b=4096):
    """Pallas wrapper: z [B, D], cluster_centers [K, D] -> q [B, K] (float32)."""
    B, D = z.shape
    K, D2 = cluster_centers.shape
    assert D == D2, "latent dims must match"

    # Batch tile: multiple of 8, capped so the grid has >=2 steps when the
    # batch allows it (keeps both v7x TensorCores busy for mid-size B).
    TB = min(block_b, max(8, _round_up(pl.cdiv(B, 2), 8)))
    grid = (pl.cdiv(B, TB),)                     # ragged last tile handled by Pallas

    c_f32 = cluster_centers.astype(jnp.float32)
    # Hoist ||c||^2: constant over the batch grid, computed once in the wrapper.
    c_sq = jnp.sum(c_f32 * c_f32, axis=-1)[None, :]          # (1, K)

    q = pl.pallas_call(
        _clustering_kernel,
        out_shape=jax.ShapeDtypeStruct((B, K), jnp.float32),
        grid=grid,
        in_specs=[
            pl.BlockSpec((TB, D), lambda i: (i, 0)),          # z: tiled over B (native dtype)
            pl.BlockSpec((K, D), lambda i: (0, 0)),           # centers: resident
            pl.BlockSpec((1, K), lambda i: (0, 0)),           # ||c||^2: resident
        ],
        out_specs=pl.BlockSpec((TB, K), lambda i: (i, 0)),    # unpadded (TB, K) store
        compiler_params=pltpu.CompilerParams(
            dimension_semantics=("parallel",),                # megacore sharding on v7x
            vmem_limit_bytes=32 * 1024 * 1024),               # raises v5e's 16 MiB default
    )(z, c_f32, c_sq)

    return q


def clustering_layer_ref(z, cluster_centers):
    """Pure-JAX reference mirroring the PyTorch forward exactly."""
    diff = z[:, None, :].astype(jnp.float32) - cluster_centers[None, :, :].astype(jnp.float32)
    q = 1.0 / (1.0 + jnp.sum(diff * diff, axis=2))            # (B, K)
    q = q ** ((1 + 1) / 2)
    q = q / jnp.sum(q, axis=1, keepdims=True)
    return q


if __name__ == "__main__":
    key = jax.random.PRNGKey(0)
    k_z, k_c, k_z2 = jax.random.split(key, 3)

    B = 8            # batch
    latent_dim = 32  # latent feature size
    n_clusters = 8   # number of clusters

    z = jax.random.normal(k_z, (B, latent_dim), dtype=jnp.float32)
    # Deterministic "randn" init of cluster_centers (nn.Parameter(torch.randn(...)))
    cluster_centers = jax.random.normal(
        k_c, (n_clusters, latent_dim), dtype=jnp.float32)

    q = jax.block_until_ready(clustering_layer(z, cluster_centers))
    q_ref = clustering_layer_ref(z, cluster_centers)
    assert q.shape == (B, n_clusters)
    assert jnp.allclose(q, q_ref, atol=1e-5, rtol=1e-5), "mismatch vs reference"
    assert jnp.allclose(jnp.sum(q, axis=1), 1.0, atol=1e-5), "rows must sum to 1"

    # Exercise the batch grid: non-multiple B, multiple tiles, ragged last tile.
    B2 = 300
    z2 = jax.random.normal(k_z2, (B2, latent_dim), dtype=jnp.float32)
    q2 = jax.block_until_ready(clustering_layer(z2, cluster_centers, block_b=128))
    q2_ref = clustering_layer_ref(z2, cluster_centers)
    assert q2.shape == (B2, n_clusters)
    assert jnp.allclose(q2, q2_ref, atol=1e-5, rtol=1e-5), "tiled mismatch vs reference"
    assert jnp.allclose(jnp.sum(q2, axis=1), 1.0, atol=1e-5), "tiled rows must sum to 1"

    # bf16 activations path: z read in native dtype, widened in-kernel.
    z_bf16 = z2.astype(jnp.bfloat16)
    q3 = jax.block_until_ready(clustering_layer(z_bf16, cluster_centers, block_b=128))
    q3_ref = clustering_layer_ref(z_bf16.astype(jnp.float32), cluster_centers)
    assert jnp.allclose(q3, q3_ref, atol=1e-5, rtol=1e-5), "bf16 mismatch vs reference"

    print("KERNEL_OK")
</pallas_src>

<mosaic_0001>
module attributes {stable_mosaic.version = 11 : i64} {
  func.func @_clustering_kernel(%arg0: i32, %arg1: memref<8x32xf32, #tpu.memory_space<vmem>>, %arg2: memref<8x32xf32, #tpu.memory_space<vmem>>, %arg3: memref<1x8xf32, #tpu.memory_space<vmem>>, %arg4: memref<8x8xf32, #tpu.memory_space<vmem>>) attributes {dimension_semantics = [#tpu.dimension_semantics<parallel>], iteration_bounds = array<i64: 1>, scalar_prefetch = 0 : i64, scratch_operands = 0 : i64, tpu.core_type = #tpu.core_type<tc>, window_params = [{transform_indices = @transform_0, window_bounds = array<i64: 8, 32>}, {pipeline_mode = #tpu.pipeline_mode<synchronous>, transform_indices = @transform_1, window_bounds = array<i64: 8, 32>}, {pipeline_mode = #tpu.pipeline_mode<synchronous>, transform_indices = @transform_2, window_bounds = array<i64: 1, 8>}, {transform_indices = @transform_3, window_bounds = array<i64: 8, 8>}]} {
    %c0 = arith.constant 0 : index
    %c0_0 = arith.constant 0 : index
    %0 = vector.load %arg1[%c0, %c0_0] : memref<8x32xf32, #tpu.memory_space<vmem>>, vector<8x32xf32>
    %c0_1 = arith.constant 0 : index
    %c0_2 = arith.constant 0 : index
    %1 = vector.load %arg2[%c0_1, %c0_2] : memref<8x32xf32, #tpu.memory_space<vmem>>, vector<8x32xf32>
    %c0_3 = arith.constant 0 : index
    %c0_4 = arith.constant 0 : index
    %2 = vector.load %arg3[%c0_3, %c0_4] : memref<1x8xf32, #tpu.memory_space<vmem>>, vector<1x8xf32>
    %3 = arith.mulf %0, %0 : vector<8x32xf32>
    %cst = arith.constant dense<0.000000e+00> : vector<8xf32>
    %4 = vector.multi_reduction <add>, %3, %cst [1] : vector<8x32xf32> to vector<8xf32>
    %5 = vector.shape_cast %4 : vector<8xf32> to vector<8x1xf32>
    %cst_5 = arith.constant dense<0.000000e+00> : vector<8x8xf32>
    %6 = tpu.matmul %0, %1, %cst_5 {dimension_numbers = #tpu.dot_dimension_numbers<[1], [1], [0], [0], [0, 0, 1, 0], [], []>} : vector<8x32xf32>, vector<8x32xf32>, vector<8x8xf32> -> vector<8x8xf32>
    %7 = vector.broadcast %5 : vector<8x1xf32> to vector<8x8xf32>
    %8 = vector.broadcast %2 : vector<1x8xf32> to vector<8x8xf32>
    %9 = arith.addf %7, %8 : vector<8x8xf32>
    %cst_6 = arith.constant 2.000000e+00 : f32
    %10 = vector.broadcast %cst_6 : f32 to vector<8x8xf32>
    %11 = arith.mulf %10, %6 : vector<8x8xf32>
    %12 = arith.subf %9, %11 : vector<8x8xf32>
    %cst_7 = arith.constant 0.000000e+00 : f32
    %13 = vector.broadcast %cst_7 : f32 to vector<8x8xf32>
    %14 = arith.maximumf %12, %13 : vector<8x8xf32>
    %cst_8 = arith.constant 1.000000e+00 : f32
    %15 = vector.broadcast %cst_8 : f32 to vector<8x8xf32>
    %16 = arith.addf %15, %14 : vector<8x8xf32>
    %17 = tpu.reciprocal %16 {approx = true} : vector<8x8xf32> -> vector<8x8xf32>
    %18 = arith.mulf %16, %17 : vector<8x8xf32>
    %cst_9 = arith.constant 2.000000e+00 : f32
    %19 = vector.broadcast %cst_9 : f32 to vector<8x8xf32>
    %20 = arith.subf %19, %18 : vector<8x8xf32>
    %21 = arith.mulf %17, %20 : vector<8x8xf32>
    %cst_10 = arith.constant dense<0.000000e+00> : vector<8xf32>
    %22 = vector.multi_reduction <add>, %21, %cst_10 [1] : vector<8x8xf32> to vector<8xf32>
    %23 = vector.shape_cast %22 : vector<8xf32> to vector<8x1xf32>
    %24 = tpu.reciprocal %23 {approx = true} : vector<8x1xf32> -> vector<8x1xf32>
    %25 = arith.mulf %23, %24 : vector<8x1xf32>
    %cst_11 = arith.constant 2.000000e+00 : f32
    %26 = vector.broadcast %cst_11 : f32 to vector<8x1xf32>
    %27 = arith.subf %26, %25 : vector<8x1xf32>
    %28 = arith.mulf %24, %27 : vector<8x1xf32>
    %29 = vector.broadcast %28 : vector<8x1xf32> to vector<8x8xf32>
    %30 = arith.mulf %21, %29 : vector<8x8xf32>
    %c0_12 = arith.constant 0 : index
    %c0_13 = arith.constant 0 : index
    %31 = vector.load %arg4[%c0_12, %c0_13] : memref<8x8xf32, #tpu.memory_space<vmem>>, vector<8x8xf32>
    tpu.vector_store %arg4[%c0_12, %c0_13], %30 {strides = array<i32>} : memref<8x8xf32, #tpu.memory_space<vmem>>, vector<8x8xf32>,
    return
  }
  func.func @transform_0(%arg0: i32) -> (i32, i32) {
    %c0_i32 = arith.constant 0 : i32
    %c0_i32_0 = arith.constant 0 : i32
    return %arg0, %c0_i32 : i32, i32
  }
  func.func @transform_1(%arg0: i32) -> (i32, i32) {
    %c0_i32 = arith.constant 0 : i32
    %c0_i32_0 = arith.constant 0 : i32
    %c0_i32_1 = arith.constant 0 : i32
    return %c0_i32, %c0_i32_0 : i32, i32
  }
  func.func @transform_2(%arg0: i32) -> (i32, i32) {
    %c0_i32 = arith.constant 0 : i32
    %c0_i32_0 = arith.constant 0 : i32
    %c0_i32_1 = arith.constant 0 : i32
    return %c0_i32, %c0_i32_0 : i32, i32
  }
  func.func @transform_3(%arg0: i32) -> (i32, i32) {
    %c0_i32 = arith.constant 0 : i32
    %c0_i32_0 = arith.constant 0 : i32
    return %arg0, %c0_i32 : i32, i32
  }
}

</mosaic_0001>

<llo_original>
// kernel: tpu_custom_call.1
$region0: #{tpu_custom_call.1}
  #allocation0 [shape = 'u32[]', space=smem, size = 0x4, offset = 0x4, fixed_abs, tag = 'smem constant byte address 0x4 - core index']
  #allocation1 [shape = 'u32[144,128]{1,0:T(1,128)}', space=vmem, size = 0x12000, scoped, tag = 'internal scratch']
  %s0 = inlined_call_operand.hbm [shape: f32[8,32], index: 0, kind: input, shape index: {}]
  %s1 = inlined_call_operand.hbm [shape: f32[8,32], index: 1, kind: input, shape index: {}]
  %s2 = inlined_call_operand.vmem [shape: f32[1,8], index: 2, kind: input, shape index: {}]
  %s3 = inlined_call_operand.hbm [shape: f32[8,8], index: 3, kind: output, shape index: {}]
  %s4 = sld [smem:[#allocation0]]
  $region30: #{tpu_custom_call.1} parent=0
    _
  %s6 = ssub.s32 1, %s4
  %s7 = scalar_select 0, %s6, %s4
  $region1: #{tpu_custom_call.1} parent=0
    #allocation2 [shape = 'u8[4096]{0}', space=vmem, size = 0x1000, scoped, tag = 'input window, operand 0, single buffered']
    #allocation3 [shape = 's32[1]{0}', space=sflag, size = 0x4, scoped, tag = 'scoped memory for tpu_custom_call.1']
    #allocation4 [shape = 's32[1]{0}', space=sflag, size = 0x4, scoped, tag = 'scoped memory for tpu_custom_call.1']
    #allocation5 [shape = 'u8[4096]{0}', space=vmem, size = 0x1000, scoped, tag = 'input window, operand 1, single buffered']
    #allocation6 [shape = 's32[1]{0}', space=sflag, size = 0x4, scoped, tag = 'scoped memory for tpu_custom_call.1']
    #allocation7 [shape = 'u8[4096]{0}', space=vmem, size = 0x1000, scoped, tag = 'output window, operand 0, single buffered']
    %8 = vsyncpa [#allocation3], 0
    %9 = vsyncpa [#allocation6], 0
    %10 = vsyncpa [#allocation4], 0
    // Predicated region
    $region2: #{tpu_custom_call.1} parent=1 // pred_check
      _
    $region3: #{tpu_custom_call.1} parent=1 // pred_check_branch
      %12 = sbr.rel (0) target = $region5
    $region4: #{tpu_custom_call.1} parent=1 // pred_region
      %s14 = ssub.s32 128, 128
      %15 = vsyncadd [#allocation3], %s14
      %s17 = sshll.u32 [#allocation2], 4
      %s18 = int_to_ptr.vmem [resolvable:$true] %s17
      %20 = dma.hbm_to_vmem [thread:$0]  %s0, 128, %s18, [#allocation3]
    $region5: #{tpu_custom_call.1} parent=1 // pred_fallthru
      _
    // Predicated region
    $region6: #{tpu_custom_call.1} parent=1 // pred_check
      _
    $region7: #{tpu_custom_call.1} parent=1 // pred_check_branch
      %22 = sbr.rel (0) target = $region9
    $region8: #{tpu_custom_call.1} parent=1 // pred_region
      %s24 = ssub.s32 128, 128
      %25 = vsyncadd [#allocation6], %s24
      %s27 = sshll.u32 [#allocation5], 4
      %s28 = int_to_ptr.vmem [resolvable:$true] %s27
      %30 = dma.hbm_to_vmem [thread:$0]  %s1, 128, %s28, [#allocation6]
    $region9: #{tpu_custom_call.1} parent=1 // pred_fallthru
      _
    // Predicated region
    $region10: #{tpu_custom_call.1} parent=1 // pred_check
      _
    $region11: #{tpu_custom_call.1} parent=1 // pred_check_branch
      %32 = sbr.rel (0) target = $region13
    $region12: #{tpu_custom_call.1} parent=1 // pred_region
      _
    $region13: #{tpu_custom_call.1} parent=1 // pred_fallthru
      _
    // Predicated region
    $region14: #{tpu_custom_call.1} parent=1 // pred_check
      _
    $region15: #{tpu_custom_call.1} parent=1 // pred_check_branch
      %34 = sbr.rel (0) target = $region17
    $region16: #{tpu_custom_call.1} parent=1 // pred_region
      %35 = dma.done [#allocation3], 128
    $region17: #{tpu_custom_call.1} parent=1 // pred_fallthru
      _
    // Predicated region
    $region18: #{tpu_custom_call.1} parent=1 // pred_check
      _
    $region19: #{tpu_custom_call.1} parent=1 // pred_check_branch
      %37 = sbr.rel (0) target = $region21
    $region20: #{tpu_custom_call.1} parent=1 // pred_region
      %38 = dma.done [#allocation6], 128
    $region21: #{tpu_custom_call.1} parent=1 // pred_fallthru
      _
    %v39 = vld [vmem:[#allocation2] sm:$0xff]
    %v40 = vld [vmem:[#allocation5] sm:$0xff]
    %v41 = vld [vmem:[%s2] sm:$0x1]
    %v42 = vmul.f32 %v39, %v39
    %vm43 = vcmask 261120
    %v44 = vsel %vm43, %v42, 0.0
    %45 = vadd.xlane.f32.xlu0 %v44
    %v46 = vpop.xlane.xlu0 %45
    %v48 = vsel %vm43, %v39, 0
    %v51 = vsel %vm43, %v40, 0
    %53 = vmatprep.subr.mxu0 0.0
    %54 = vmatpush1.xpose.msra.mxu0 %v51
    %55 = vmatprep.subr.mxu0 0.0
    %56 = vmatpush1.xpose.msra.mxu0 0.0
    %57 = vmatprep.subr.mxu0 0.0
    %58 = vmatpush1.xpose.msra.mxu0 0.0
    %59 = vmatprep.subr.mxu0 0.0
    %60 = vmatpush1.xpose.msra.mxu0 0.0
    %61 = vmatprep.subr.mxu0 0.0
    %62 = vmatpush1.xpose.msra.mxu0 0.0
    %63 = vmatprep.subr.mxu0 0.0
    %64 = vmatpush1.xpose.msra.mxu0 0.0
    %65 = vmatprep.subr.mxu0 0.0
    %66 = vmatpush1.xpose.msra.mxu0 0.0
    %67 = vmatprep.subr.mxu0 0.0
    %68 = vmatpush1.xpose.msra.mxu0 0.0
    %69 = vmatprep.subr.mxu0 0.0
    %70 = vmatpush1.xpose.msra.mxu0 0.0
    %71 = vmatprep.subr.mxu0 0.0
    %72 = vmatpush1.xpose.msra.mxu0 0.0
    %73 = vmatprep.subr.mxu0 0.0
    %74 = vmatpush1.xpose.msra.mxu0 0.0
    %75 = vmatprep.subr.mxu0 0.0
    %76 = vmatpush1.xpose.msra.mxu0 0.0
    %77 = vmatprep.subr.mxu0 0.0
    %78 = vmatpush1.xpose.msra.mxu0 0.0
    %79 = vmatprep.subr.mxu0 0.0
    %80 = vmatpush1.xpose.msra.mxu0 0.0
    %81 = vmatprep.subr.mxu0 0.0
    %82 = vmatpush1.xpose.msra.mxu0 0.0
    %83 = vmatprep.subr.mxu0 0.0
    %84 = vmatpush1.xpose.msra.mxu0 0.0
    %85 = vmatprep.subr.mxu0 0.0
    %86 = vmatpush1.xpose.msra.mxu0 0.0
    %87 = vmatprep.subr.mxu0 0.0
    %88 = vmatpush1.xpose.msra.mxu0 0.0
    %89 = vmatprep.subr.mxu0 0.0
    %90 = vmatpush1.xpose.msra.mxu0 0.0
    %91 = vmatprep.subr.mxu0 0.0
    %92 = vmatpush1.xpose.msra.mxu0 0.0
    %93 = vmatprep.subr.mxu0 0.0
    %94 = vmatpush1.xpose.msra.mxu0 0.0
    %95 = vmatprep.subr.mxu0 0.0
    %96 = vmatpush1.xpose.msra.mxu0 0.0
    %97 = vmatprep.subr.mxu0 0.0
    %98 = vmatpush1.xpose.msra.mxu0 0.0
    %99 = vmatprep.subr.mxu0 0.0
    %100 = vmatpush1.xpose.msra.mxu0 0.0
    %101 = vmatprep.subr.mxu0 0.0
    %102 = vmatpush1.xpose.msra.mxu0 0.0
    %103 = vmatprep.subr.mxu0 0.0
    %104 = vmatpush1.xpose.msra.mxu0 0.0
    %105 = vmatprep.subr.mxu0 0.0
    %106 = vmatpush1.xpose.msra.mxu0 0.0
    %107 = vmatprep.subr.mxu0 0.0
    %108 = vmatpush1.xpose.msra.mxu0 0.0
    %109 = vmatprep.subr.mxu0 0.0
    %110 = vmatpush1.xpose.msra.mxu0 0.0
    %111 = vmatprep.subr.mxu0 0.0
    %112 = vmatpush1.xpose.msra.mxu0 0.0
    %113 = vmatprep.subr.mxu0 0.0
    %114 = vmatpush1.xpose.msra.mxu0 0.0
    %115 = vmatprep.subr.mxu0 0.0
    %116 = vmatpush1.xpose.msra.mxu0 0.0
    %117 = vmatprep.mubr.f32.mxu0 0.0
    %118 = vmatmul.mubr.f32.gmra.mrb[0].mxu0 %v48
    %v119 = vpop.f32.mrb[0].mxu0
    %v120 = vadd.f32 0.0, %v119
    %v121 = vpop.f32.mrb[0].mxu0
    %122 = vdwg.mxu0
    %v124 = vlaneseq
    %v125 = vshrl.u32 %v124, 7
    %v126 = vsub.s32 0, %v125
    %v127 = vrot.slane %v41, %v126
    %v129 = vadd.f32 %v46, %v127
    %v130 = vmul.f32 %v120, 2.0
    %v131 = vsub.f32 %v129, %v130
    %v132 = vmax.f32 %v131, 0.0
    %v133 = vadd.f32 %v132, 1.0
    %v134 = vrcp.pop %v133
    %v135 = vmul.f32 %v133, %v134
    %v136 = vsub.f32 2.0, %v135
    %v137 = vmul.f32 %v134, %v136
    %vm138 = vcmask 64512
    %v139 = vsel %vm138, %v137, 0.0
    %140 = vadd.xlane.f32.xlu0 %v139
    %v141 = vpop.xlane.xlu0 %140
    %v142 = vrcp.pop %v141
    %v143 = vmul.f32 %v141, %v142
    %v144 = vsub.f32 2.0, %v143
    %v145 = vmul.f32 %v142, %v144
    %v146 = vmul.f32 %v137, %v145
    %147 = vst.msk [vmem:[#allocation7] sm:$0xff] %vm138, %v146
    // Predicated region
    $region22: #{tpu_custom_call.1} parent=1 // pred_check
      _
    $region23: #{tpu_custom_call.1} parent=1 // pred_check_branch
      %149 = sbr.rel (0) target = $region25
    $region24: #{tpu_custom_call.1} parent=1 // pred_region
      %s151 = ssub.s32 128, 128
      %152 = vsyncadd [#allocation4], %s151
      %s154 = sshll.u32 [#allocation7], 4
      %s155 = int_to_ptr.vmem [resolvable:$true] %s154
      %157 = dma.vmem_to_hbm [thread:$0]  %s155, 128, %s3, [#allocation4]
    $region25: #{tpu_custom_call.1} parent=1 // pred_fallthru
      _
    // Predicated region
    $region26: #{tpu_custom_call.1} parent=1 // pred_check
      _
    $region27: #{tpu_custom_call.1} parent=1 // pred_check_branch
      %159 = sbr.rel (0) target = $region29
    $region28: #{tpu_custom_call.1} parent=1 // pred_region
      %160 = dma.done [#allocation4], 128
    $region29: #{tpu_custom_call.1} parent=1 // pred_fallthru
      _
    %161 = vsyncpa [#allocation3], 1
    %162 = vsyncpa [#allocation6], 1
    %163 = vsyncpa [#allocation4], 1

</llo_original>
